<compile_context>
chip_gen: v6e
topology: v6e:2x2x1
jax: 0.10.0
libtpu: 0.0.40
codegen_flags: <defaults>
</compile_context>

<pallas_src>
import math

import jax
import jax.numpy as jnp
from jax import lax
from jax.experimental import pallas as pl
from jax.experimental.pallas import tpu as pltpu

_EPS = 1e-12


def _round_up(v, k):
    return -(-v // k) * k


def _choose_tiles(B, N, D, dot_dtype, out_dtype, tile_b=None, tile_n=None,
                  vmem_budget_bytes=36 * 2**20):
    """Pick lane-dense tiles whose double-buffered footprint fits the budget."""
    dsize = jnp.dtype(dot_dtype).itemsize
    osize = jnp.dtype(out_dtype).itemsize
    if tile_b is None:
        tile_b = min(_round_up(B, 8), 256)
    if tile_n is None:
        tile_n = min(_round_up(N, 128), 2048)

    def footprint(tb, tn):
        per_step = (tb * D * dsize      # x tile
                    + tn * D * dsize    # weight tile
                    + tn * 4 + tb * 4   # inv_w_norm + labels
                    + tb * tn * osize)  # output tile
        return 2 * per_step             # double-buffered

    while footprint(tile_b, tile_n) > vmem_budget_bytes and tile_n > 128:
        tile_n = max(128, _round_up(tile_n // 2, 128))
    while footprint(tile_b, tile_n) > vmem_budget_bytes and tile_b > 8:
        tile_b = max(8, _round_up(tile_b // 2, 8))
    return tile_b, tile_n, footprint(tile_b, tile_n)


def prepare_arcface_weights(weight, *, tile_n, dot_dtype=jnp.float32):
    """One-time weight prep: cast to the streaming dtype, pad to tile_n, and
    precompute per-class reciprocal norms.  Cache the result across forwards
    so no full N*D HBM copies happen in the per-call hot path."""
    N, D = weight.shape
    N_pad = _round_up(N, tile_n)
    w = weight.astype(dot_dtype)
    if N_pad != N:
        w = jnp.pad(w, ((0, N_pad - N), (0, 0)))
    # Norms from the rounded weight so cosine matches the MXU operands.
    w32 = w.astype(jnp.float32)
    inv_w_norm = lax.rsqrt(
        jnp.maximum(jnp.sum(w32 * w32, axis=1), _EPS * _EPS)).reshape(1, N_pad)
    return {"w": w, "inv_w_norm": inv_w_norm, "n_classes": N,
            "tile_n": tile_n, "dot_dtype": jnp.dtype(dot_dtype)}


def _make_arcface_kernel(s, cos_m, sin_m, th, mm, easy_margin):
    s = float(s)
    cos_m = float(cos_m)
    sin_m_s = float(sin_m * s)   # s folded into the margin constants
    th_s = float(th * s)
    mm_s = float(mm * s)

    def kernel(xn_ref, w_ref, inv_wn_ref, lab_ref, out_ref):
        j = pl.program_id(0)  # class-tile index (outer grid axis)

        # cosine = (x_n @ w.T) * inv_w_norm; contraction on dim 1 of both
        # operands feeds the MXU without materializing a transpose of w.
        dots = lax.dot_general(
            xn_ref[...], w_ref[...],
            dimension_numbers=(((1,), (1,)), ((), ())),
            preferred_element_type=jnp.float32,
        )                                            # (TB, TN) f32
        cosine = dots * inv_wn_ref[...]
        cs = cosine * s                              # cosine * s, reused below

        # 1 - cosine^2 <= 1 always, so only the lower clamp is needed.
        sine = jnp.sqrt(jnp.maximum(1.0 - cosine * cosine, 1e-9))
        phi_s = cs * cos_m - sine * sin_m_s          # == phi * s
        if easy_margin:
            phi_s = jnp.where(cs > 0.0, phi_s, cs)
        else:
            phi_s = jnp.where(cs > th_s, phi_s, cs - mm_s)

        # one_hot: local column iota vs (label - j*TN); padded rows use -1.
        TB, TN = cs.shape
        col_ids = lax.broadcasted_iota(jnp.int32, (TB, TN), 1)
        one_hot = col_ids == (lab_ref[...] - j * TN)

        out_ref[...] = jnp.where(one_hot, phi_s, cs).astype(out_ref.dtype)

    return kernel


def arcface_forward(x, weight, label, *, s=64.0, m=0.5, easy_margin=False,
                    tile_b=None, tile_n=None, dot_dtype=jnp.float32,
                    out_dtype=jnp.float32, prepared=None,
                    vmem_budget_bytes=36 * 2**20):
    """x: (B, D), weight: (N, D) (or None if `prepared` is given), label: (B,).

    Returns (B, N) logits matching PyTorch ArcFace.forward (device_id=None).
    `dot_dtype=jnp.bfloat16` streams bf16 weights / MXU operands with f32
    accumulation; `prepared=prepare_arcface_weights(...)` skips all per-call
    weight-side work.
    """
    B, D = x.shape
    if prepared is not None:
        dot_dtype = prepared["dot_dtype"]
        tile_n = prepared["tile_n"]
        N = prepared["n_classes"]
    else:
        N, D2 = weight.shape
        assert D == D2

    tile_b, tile_n, fp = _choose_tiles(
        B, N, D, dot_dtype, out_dtype,
        tile_b=tile_b, tile_n=tile_n, vmem_budget_bytes=vmem_budget_bytes)

    if prepared is None:
        prepared = prepare_arcface_weights(weight, tile_n=tile_n,
                                           dot_dtype=dot_dtype)
    w_stream = prepared["w"]
    inv_w_norm = prepared["inv_w_norm"]
    N_pad = w_stream.shape[0]
    assert w_stream.shape[1] == D

    # x-side prep, hoisted out of the kernel (done once, not once per class
    # tile): F.normalize(x) == x * rsqrt(max(sum(x^2), eps^2)), then cast.
    x32 = x.astype(jnp.float32)
    inv_xn = lax.rsqrt(
        jnp.maximum(jnp.sum(x32 * x32, axis=1, keepdims=True), _EPS * _EPS))
    x_n = (x32 * inv_xn).astype(dot_dtype)
    lab = jnp.asarray(label).reshape(B, 1).astype(jnp.int32)

    B_pad = _round_up(B, tile_b)
    if B_pad != B:
        x_n = jnp.pad(x_n, ((0, B_pad - B), (0, 0)))
        lab = jnp.pad(lab, ((0, B_pad - B), (0, 0)), constant_values=-1)

    kernel = _make_arcface_kernel(
        s=float(s), cos_m=math.cos(m), sin_m=math.sin(m),
        th=math.cos(math.pi - m), mm=math.sin(math.pi - m) * m,
        easy_margin=easy_margin)

    n_j = N_pad // tile_n
    n_i = B_pad // tile_b
    grid = (n_j, n_i)  # class tiles OUTER (weight resident over inner axis)

    dsize = jnp.dtype(dot_dtype).itemsize
    osize = jnp.dtype(out_dtype).itemsize
    cost = pl.CostEstimate(
        flops=2 * B_pad * N_pad * D,
        transcendentals=B_pad * N_pad,
        bytes_accessed=int(N_pad * D * dsize          # weight streamed once
                           + n_j * B_pad * D * dsize  # x re-streamed per class tile
                           + N_pad * 4 + n_j * B_pad * 4
                           + B_pad * N_pad * osize),
    )
    vmem_limit = int(min(60 * 2**20, max(32 * 2**20, 2 * fp)))

    out = pl.pallas_call(
        kernel,
        out_shape=jax.ShapeDtypeStruct((B_pad, N_pad), out_dtype),
        grid_spec=pltpu.PrefetchScalarGridSpec(
            num_scalar_prefetch=0,
            grid=grid,
            in_specs=[
                pl.BlockSpec((tile_b, D), lambda j, i: (i, 0)),   # x_n tile
                pl.BlockSpec((tile_n, D), lambda j, i: (j, 0)),   # weight tile (resident over i)
                pl.BlockSpec((1, tile_n), lambda j, i: (0, j)),   # inv_w_norm tile
                pl.BlockSpec((tile_b, 1), lambda j, i: (i, 0)),   # labels tile
            ],
            out_specs=pl.BlockSpec((tile_b, tile_n), lambda j, i: (i, j)),
        ),
        compiler_params=pltpu.CompilerParams(
            dimension_semantics=("parallel", "parallel"),
            vmem_limit_bytes=vmem_limit,
        ),
        cost_estimate=cost,
    )(x_n, w_stream, inv_w_norm, lab)

    if B_pad != B or N_pad != N:
        out = out[:B, :N]
    return out


def xavier_uniform(key, out_features, in_features):
    # nn.init.xavier_uniform_ on a (out_features, in_features) tensor.
    bound = math.sqrt(6.0 / (in_features + out_features))
    return jax.random.uniform(
        key, (out_features, in_features), jnp.float32, -bound, bound)


def arcface_reference(x, w, label, s=64.0, m=0.5, easy_margin=False):
    xn = x / jnp.maximum(jnp.linalg.norm(x, axis=1, keepdims=True), 1e-12)
    wn = w / jnp.maximum(jnp.linalg.norm(w, axis=1, keepdims=True), 1e-12)
    cosine = xn @ wn.T
    sine = jnp.sqrt(jnp.clip(1.0 - cosine**2, 1e-9, 1.0))
    phi = cosine * math.cos(m) - sine * math.sin(m)
    if easy_margin:
        phi = jnp.where(cosine > 0.0, phi, cosine)
    else:
        phi = jnp.where(cosine > math.cos(math.pi - m), phi,
                        cosine - math.sin(math.pi - m) * m)
    one_hot = jax.nn.one_hot(label, w.shape[0], dtype=jnp.bool_)
    return jnp.where(one_hot, phi, cosine) * s


if __name__ == "__main__":
    key = jax.random.PRNGKey(0)
    k_x, k_w, k_lab = jax.random.split(key, 3)

    # Small shapes, but large enough to exercise a real (2, 2) tile grid.
    B, in_features, out_features = 16, 64, 512

    x = jax.random.normal(k_x, (B, in_features), jnp.float32)
    weight = xavier_uniform(k_w, out_features, in_features)
    label = jax.random.randint(k_lab, (B,), 0, out_features, jnp.int32)

    expected = arcface_reference(x, weight, label, s=64.0, m=0.5)

    # 1) f32 MXU path, forced tiled grid (2 class tiles x 2 batch tiles).
    out_f32 = arcface_forward(
        x, weight, label, s=64.0, m=0.5, easy_margin=False,
        tile_b=8, tile_n=256, dot_dtype=jnp.float32)
    out_f32 = jax.block_until_ready(out_f32)
    assert out_f32.shape == (B, out_features)
    assert jnp.allclose(out_f32, expected, atol=5e-4, rtol=1e-4)

    # 2) bf16 weight-streaming path (throughput config): loose check.
    out_bf16 = arcface_forward(
        x, weight, label, s=64.0, m=0.5, easy_margin=False,
        tile_b=8, tile_n=256, dot_dtype=jnp.bfloat16)
    out_bf16 = jax.block_until_ready(out_bf16)
    assert float(jnp.max(jnp.abs(out_bf16 - expected))) < 1.5

    # 3) default (auto-tile) config + easy_margin branch.
    out_easy = arcface_forward(x, weight, label, easy_margin=True)
    out_easy = jax.block_until_ready(out_easy)
    exp_easy = arcface_reference(x, weight, label, easy_margin=True)
    assert jnp.allclose(out_easy, exp_easy, atol=5e-4, rtol=1e-4)

    # 4) prepared-weights path (weight cast/pad/norms hoisted out of the call).
    prepared = prepare_arcface_weights(weight, tile_n=512,
                                       dot_dtype=jnp.float32)
    out_prep = arcface_forward(x, None, label, prepared=prepared)
    out_prep = jax.block_until_ready(out_prep)
    assert jnp.allclose(out_prep, expected, atol=5e-4, rtol=1e-4)

    # 5) bf16 logits output (halves the B*N writeback stream).
    out_b16o = arcface_forward(x, weight, label, out_dtype=jnp.bfloat16)
    out_b16o = jax.block_until_ready(out_b16o)
    assert float(jnp.max(jnp.abs(out_b16o.astype(jnp.float32) - expected))) < 0.5

    print("KERNEL_OK")
</pallas_src>

<mosaic_0001>
module attributes {stable_mosaic.version = 11 : i64} {
  func.func @kernel(%arg0: i32, %arg1: i32, %arg2: memref<8x64xf32, #tpu.memory_space<vmem>>, %arg3: memref<256x64xf32, #tpu.memory_space<vmem>>, %arg4: memref<1x256xf32, #tpu.memory_space<vmem>>, %arg5: memref<8x1xi32, #tpu.memory_space<vmem>>, %arg6: memref<8x256xf32, #tpu.memory_space<vmem>>) attributes {dimension_semantics = [#tpu.dimension_semantics<parallel>, #tpu.dimension_semantics<parallel>], iteration_bounds = array<i64: 2, 2>, scalar_prefetch = 0 : i64, scratch_operands = 0 : i64, tpu.core_type = #tpu.core_type<tc>, window_params = [{transform_indices = @transform_0, window_bounds = array<i64: 8, 64>}, {transform_indices = @transform_1, window_bounds = array<i64: 256, 64>}, {transform_indices = @transform_2, window_bounds = array<i64: 1, 256>}, {transform_indices = @transform_3, window_bounds = array<i64: 8, 1>}, {transform_indices = @transform_4, window_bounds = array<i64: 8, 256>}]} {
    %c0 = arith.constant 0 : index
    %c0_0 = arith.constant 0 : index
    %0 = vector.load %arg2[%c0, %c0_0] : memref<8x64xf32, #tpu.memory_space<vmem>>, vector<8x64xf32>
    %c0_1 = arith.constant 0 : index
    %c0_2 = arith.constant 0 : index
    %1 = vector.load %arg3[%c0_1, %c0_2] : memref<256x64xf32, #tpu.memory_space<vmem>>, vector<256x64xf32>
    %cst = arith.constant dense<0.000000e+00> : vector<8x256xf32>
    %2 = tpu.matmul %0, %1, %cst {dimension_numbers = #tpu.dot_dimension_numbers<[1], [1], [0], [0], [0, 0, 1, 0], [], []>} : vector<8x64xf32>, vector<256x64xf32>, vector<8x256xf32> -> vector<8x256xf32>
    %c0_3 = arith.constant 0 : index
    %c0_4 = arith.constant 0 : index
    %3 = vector.load %arg4[%c0_3, %c0_4] : memref<1x256xf32, #tpu.memory_space<vmem>>, vector<1x256xf32>
    %4 = vector.broadcast %3 : vector<1x256xf32> to vector<8x256xf32>
    %5 = arith.mulf %2, %4 : vector<8x256xf32>
    %cst_5 = arith.constant 6.400000e+01 : f32
    %6 = vector.broadcast %cst_5 : f32 to vector<8x256xf32>
    %7 = arith.mulf %5, %6 : vector<8x256xf32>
    %8 = arith.mulf %5, %5 : vector<8x256xf32>
    %cst_6 = arith.constant 1.000000e+00 : f32
    %9 = vector.broadcast %cst_6 : f32 to vector<8x256xf32>
    %10 = arith.subf %9, %8 : vector<8x256xf32>
    %cst_7 = arith.constant 9.99999971E-10 : f32
    %11 = vector.broadcast %cst_7 : f32 to vector<8x256xf32>
    %12 = arith.maximumf %10, %11 : vector<8x256xf32>
    %13 = math.sqrt %12 : vector<8x256xf32>
    %cst_8 = arith.constant 0.87758255 : f32
    %14 = vector.broadcast %cst_8 : f32 to vector<8x256xf32>
    %15 = arith.mulf %7, %14 : vector<8x256xf32>
    %cst_9 = arith.constant 30.6832352 : f32
    %16 = vector.broadcast %cst_9 : f32 to vector<8x256xf32>
    %17 = arith.mulf %13, %16 : vector<8x256xf32>
    %18 = arith.subf %15, %17 : vector<8x256xf32>
    %cst_10 = arith.constant -56.1652832 : f32
    %19 = vector.broadcast %cst_10 : f32 to vector<8x256xf32>
    %20 = arith.cmpf ogt, %7, %19 : vector<8x256xf32>
    %cst_11 = arith.constant 15.3416176 : f32
    %21 = vector.broadcast %cst_11 : f32 to vector<8x256xf32>
    %22 = arith.subf %7, %21 : vector<8x256xf32>
    %23 = arith.select %20, %18, %22 : vector<8x256xi1>, vector<8x256xf32>
    %24 = tpu.iota {dimensions = array<i32: 1>} : vector<8x256xi32>
    %c0_12 = arith.constant 0 : index
    %c0_13 = arith.constant 0 : index
    %25 = vector.load %arg5[%c0_12, %c0_13] : memref<8x1xi32, #tpu.memory_space<vmem>>, vector<8x1xi32>
    %c256_i32 = arith.constant 256 : i32
    %26 = arith.muli %arg0, %c256_i32 : i32
    %27 = vector.broadcast %26 : i32 to vector<8x1xi32>
    %28 = arith.subi %25, %27 : vector<8x1xi32>
    %29 = vector.broadcast %28 : vector<8x1xi32> to vector<8x256xi32>
    %30 = arith.cmpi eq, %24, %29 : vector<8x256xi32>
    %31 = arith.select %30, %23, %7 : vector<8x256xi1>, vector<8x256xf32>
    %c0_14 = arith.constant 0 : index
    %c0_15 = arith.constant 0 : index
    %32 = vector.load %arg6[%c0_14, %c0_15] : memref<8x256xf32, #tpu.memory_space<vmem>>, vector<8x256xf32>
    tpu.vector_store %arg6[%c0_14, %c0_15], %31 {strides = array<i32>} : memref<8x256xf32, #tpu.memory_space<vmem>>, vector<8x256xf32>,
    return
  }
  func.func @transform_0(%arg0: i32, %arg1: i32) -> (i32, i32) {
    %c0_i32 = arith.constant 0 : i32
    %c0_i32_0 = arith.constant 0 : i32
    return %arg1, %c0_i32 : i32, i32
  }
  func.func @transform_1(%arg0: i32, %arg1: i32) -> (i32, i32) {
    %c0_i32 = arith.constant 0 : i32
    %c0_i32_0 = arith.constant 0 : i32
    return %arg0, %c0_i32 : i32, i32
  }
  func.func @transform_2(%arg0: i32, %arg1: i32) -> (i32, i32) {
    %c0_i32 = arith.constant 0 : i32
    %c0_i32_0 = arith.constant 0 : i32
    return %c0_i32, %arg0 : i32, i32
  }
  func.func @transform_3(%arg0: i32, %arg1: i32) -> (i32, i32) {
    %c0_i32 = arith.constant 0 : i32
    %c0_i32_0 = arith.constant 0 : i32
    return %arg1, %c0_i32 : i32, i32
  }
  func.func @transform_4(%arg0: i32, %arg1: i32) -> (i32, i32) {
    %c0_i32 = arith.constant 0 : i32
    return %arg1, %arg0 : i32, i32
  }
}

</mosaic_0001>

<llo_original>
// kernel: tpu_custom_call.1
$region0: #{tpu_custom_call.1}
  #allocation0 [shape = 'u32[]', space=smem, size = 0x4, offset = 0x4, fixed_abs, tag = 'smem constant byte address 0x4 - core index']
  #allocation1 [shape = 'u32[144,128]{1,0:T(1,128)}', space=vmem, size = 0x12000, scoped, tag = 'internal scratch']
  %s0 = inlined_call_operand.vmem [shape: f32[16,64], index: 0, kind: input, shape index: {}]
  %s1 = inlined_call_operand.vmem [shape: f32[512,64], index: 1, kind: input, shape index: {}]
  %s2 = inlined_call_operand.vmem [shape: f32[1,512], index: 2, kind: input, shape index: {}]
  %s3 = inlined_call_operand.vmem [shape: s32[16,1], index: 3, kind: input, shape index: {}]
  %s4 = inlined_call_operand.hbm [shape: f32[16,512], index: 4, kind: output, shape index: {}]
  %s5 = sld [smem:[#allocation0]]
  $region49: #{tpu_custom_call.1} parent=0
    _
  %s7 = ssub.s32 1, %s5
  %s8 = scalar_select 0, %s7, %s5
  $region1: #{tpu_custom_call.1} parent=0
    #allocation2 [shape = 'u8[16384]{0}', space=vmem, size = 0x4000, scoped, tag = 'output window, operand 0']
    #allocation3 [shape = 's32[2]{0}', space=sflag, size = 0x8, scoped, tag = 'scoped memory for tpu_custom_call.1']
    %9 = vsyncpa [#allocation3], 0
    %s10 = scalar_lea.sflag [#allocation3], 1
    %11 = vsyncpa %s10, 0
    loop: start=0, step=1, limit=6
    $region2: #{tpu_custom_call.1} parent=1 // loop_pre_header
      _
    $region3: #{tpu_custom_call.1} parent=1 // loop_header
      %s13 = sphi 0, %s17
      %p14 = scmp.ge.s32.totalorder %s13, 6
      %s20 = sphi 0, %s32
      %s21 = sphi 0, %s28
      %s22 = sphi 0, %s20
      %s23 = sphi 0, %s21
      %s24 = sphi 0, %s22
      %s25 = sphi 0, %s23
      %s35 = sphi 0, %s37
      %s38 = sphi 0, %s35
      %s39 = sphi 0, %s38
      %s55 = sphi 0, %s39
      %s61 = sphi 0, %s63
      %s64 = sphi 0, %s61
      %s65 = sphi 0, %s64
      %s81 = sphi 0, %s65
      %s87 = sphi 0, %s89
      %s90 = sphi 0, %s87
      %s91 = sphi 0, %s90
      %s107 = sphi 0, %s91
      %s113 = sphi 0, %s115
      %s116 = sphi 0, %s113
      %s117 = sphi 0, %s116
      %s133 = sphi 0, %s117
      %s141 = sphi 0, %s143
      %s144 = sphi 0, %s141
      %s145 = sphi 0, %s144
      %s161 = sphi 0, %s145
    $region4: #{tpu_custom_call.1} parent=1 // loop_header_branch
      %16 = sbr.rel (%p14) target = $region8
    $region5: #{tpu_custom_call.1} parent=1 // loop_body
      %s18 = ssub.s32 %s13, 1
      %s19 = ssub.s32 %s13, 2
      %s26 = sadd.s32 1, %s21
      %p27 = scmp.ge.s32.totalorder %s26, 2
      %s28 = scalar_select %p27, 0, %s26
      %s29 = sadd.s32 1, %s20
      %s30 = scalar_select %p27, %s29, %s20
      %p31 = scmp.ge.s32.totalorder %s30, 2
      %s32 = scalar_select %p31, 0, %s30
      %s33 = ssub.s32 %s21, %s28
      %p34 = scmp.eq.s32.totalorder %s33, 0
      %s36 = sadd.s32 %s35, 1
      %s37 = scalar_select %p34, %s35, %s36
      %p40 = pneg %p34
      %p41 = scmp.eq.s32.totalorder %s13, 3
      %p42 = por %p40, %p41
      %p43 = scmp.ne.s32.totalorder %s35, %s38
      %p44 = scmp.eq.s32.totalorder %s13, 0
      %p45 = por %p43, %p44
      %p46 = scmp.ne.s32.totalorder %s35, %s38
      %p47 = scmp.eq.s32.totalorder %s18, 3
      %p48 = por %p46, %p47
      %p49 = scmp.ne.s32.totalorder %s38, %s39
      %p50 = scmp.eq.s32.totalorder %s18, 0
      %p51 = por %p49, %p50
      %p52 = scmp.ne.s32.totalorder %s38, %s39
      %p53 = scmp.eq.s32.totalorder %s19, 3
      %p54 = por %p52, %p53
      %p56 = scmp.ne.s32.totalorder %s39, %s55
      %p57 = scmp.eq.s32.totalorder %s19, 0
      %p58 = por %p56, %p57
      %s59 = ssub.s32 %s20, %s32
      %p60 = scmp.eq.s32.totalorder %s59, 0
      %s62 = sadd.s32 %s61, 1
      %s63 = scalar_select %p60, %s61, %s62
      %p66 = pneg %p60
      %p67 = scmp.eq.s32.totalorder %s13, 3
      %p68 = por %p66, %p67
      %p69 = scmp.ne.s32.totalorder %s61, %s64
      %p70 = scmp.eq.s32.totalorder %s13, 0
      %p71 = por %p69, %p70
      %p72 = scmp.ne.s32.totalorder %s61, %s64
      %p73 = scmp.eq.s32.totalorder %s18, 3
      %p74 = por %p72, %p73
      %p75 = scmp.ne.s32.totalorder %s64, %s65
      %p76 = scmp.eq.s32.totalorder %s18, 0
      %p77 = por %p75, %p76
      %p78 = scmp.ne.s32.totalorder %s64, %s65
      %p79 = scmp.eq.s32.totalorder %s19, 3
      %p80 = por %p78, %p79
      %p82 = scmp.ne.s32.totalorder %s65, %s81
      %p83 = scmp.eq.s32.totalorder %s19, 0
      %p84 = por %p82, %p83
      %s85 = ssub.s32 %s20, %s32
      %p86 = scmp.eq.s32.totalorder %s85, 0
      %s88 = sadd.s32 %s87, 1
      %s89 = scalar_select %p86, %s87, %s88
      %p92 = pneg %p86
      %p93 = scmp.eq.s32.totalorder %s13, 3
      %p94 = por %p92, %p93
      %p95 = scmp.ne.s32.totalorder %s87, %s90
      %p96 = scmp.eq.s32.totalorder %s13, 0
      %p97 = por %p95, %p96
      %p98 = scmp.ne.s32.totalorder %s87, %s90
      %p99 = scmp.eq.s32.totalorder %s18, 3
      %p100 = por %p98, %p99
      %p101 = scmp.ne.s32.totalorder %s90, %s91
      %p102 = scmp.eq.s32.totalorder %s18, 0
      %p103 = por %p101, %p102
      %p104 = scmp.ne.s32.totalorder %s90, %s91
      %p105 = scmp.eq.s32.totalorder %s19, 3
      %p106 = por %p104, %p105
      %p108 = scmp.ne.s32.totalorder %s91, %s107
      %p109 = scmp.eq.s32.totalorder %s19, 0
      %p110 = por %p108, %p109
      %s111 = ssub.s32 %s21, %s28
      %p112 = scmp.eq.s32.totalorder %s111, 0
      %s114 = sadd.s32 %s113, 1
      %s115 = scalar_select %p112, %s113, %s114
      %p118 = pneg %p112
      %p119 = scmp.eq.s32.totalorder %s13, 3
      %p120 = por %p118, %p119
      %p121 = scmp.ne.s32.totalorder %s113, %s116
      %p122 = scmp.eq.s32.totalorder %s13, 0
      %p123 = por %p121, %p122
      %p124 = scmp.ne.s32.totalorder %s113, %s116
      %p125 = scmp.eq.s32.totalorder %s18, 3
      %p126 = por %p124, %p125
      %p127 = scmp.ne.s32.totalorder %s116, %s117
      %p128 = scmp.eq.s32.totalorder %s18, 0
      %p129 = por %p127, %p128
      %p130 = scmp.ne.s32.totalorder %s116, %s117
      %p131 = scmp.eq.s32.totalorder %s19, 3
      %p132 = por %p130, %p131
      %p134 = scmp.ne.s32.totalorder %s117, %s133
      %p135 = scmp.eq.s32.totalorder %s19, 0
      %p136 = por %p134, %p135
      %s137 = ssub.s32 %s21, %s28
      %s138 = ssub.s32 %s20, %s32
      %s139 = sor.u32 %s137, %s138
      %p140 = scmp.eq.s32.totalorder %s139, 0
      %s142 = sadd.s32 %s141, 1
      %s143 = scalar_select %p140, %s141, %s142
      %p146 = pneg %p140
      %p147 = scmp.eq.s32.totalorder %s13, 3
      %p148 = por %p146, %p147
      %p149 = scmp.ne.s32.totalorder %s141, %s144
      %p150 = scmp.eq.s32.totalorder %s13, 0
      %p151 = por %p149, %p150
      %p152 = scmp.ne.s32.totalorder %s141, %s144
      %p153 = scmp.eq.s32.totalorder %s18, 3
      %p154 = por %p152, %p153
      %p155 = scmp.ne.s32.totalorder %s144, %s145
      %p156 = scmp.eq.s32.totalorder %s18, 0
      %p157 = por %p155, %p156
      %p158 = scmp.ne.s32.totalorder %s144, %s145
      %p159 = scmp.eq.s32.totalorder %s19, 3
      %p160 = por %p158, %p159
      %p162 = scmp.ne.s32.totalorder %s145, %s161
      %p163 = scmp.eq.s32.totalorder %s19, 0
      %p164 = por %p162, %p163
      %p165 = scmp.le.s32.totalorder 1, %s13
      %p166 = scmp.lt.s32.totalorder %s13, 5
      %p167 = pnand %p165, %p166
      %p168 = pneg %p167
      // Predicated region
      $region9: #{tpu_custom_call.1} parent=5 // pred_check
        _
      $region10: #{tpu_custom_call.1} parent=5 // pred_check_branch
        %170 = sbr.rel (%p167) target = $region12
      $region11: #{tpu_custom_call.1} parent=5 // pred_region
        %s171 = ssub.s32 %s13, 1
      $region12: #{tpu_custom_call.1} parent=5 // pred_fallthru
        _
      %p172 = scmp.lt.s32.totalorder %s13, 4
      // Predicated region
      $region13: #{tpu_custom_call.1} parent=5 // pred_check
        %p173 = pneg %p172
      $region14: #{tpu_custom_call.1} parent=5 // pred_check_branch
        %175 = sbr.rel (%p173) target = $region16
      $region15: #{tpu_custom_call.1} parent=5 // pred_region
        // Predicated region
        $region17: #{tpu_custom_call.1} parent=15 // pred_check
          %p176 = pneg %p45
        $region18: #{tpu_custom_call.1} parent=15 // pred_check_branch
          %178 = sbr.rel (%p176) target = $region20
        $region19: #{tpu_custom_call.1} parent=15 // pred_region
          %p179 = scmp.lt.s32.totalorder %s21, 1
          %s180 = scalar_select %p179, %s21, 1
          %s181 = smul.addr %s180, 8
          %s182 = scalar_lea.vmem %s0, %s181
        $region20: #{tpu_custom_call.1} parent=15 // pred_fallthru
          _
        // Predicated region
        $region21: #{tpu_custom_call.1} parent=15 // pred_check
          %p183 = pneg %p71
        $region22: #{tpu_custom_call.1} parent=15 // pred_check_branch
          %185 = sbr.rel (%p183) target = $region24
        $region23: #{tpu_custom_call.1} parent=15 // pred_region
          %s186 = smul.u32 32, %s20
          %p187 = scmp.lt.s32.totalorder %s186, 63
          %s188 = scalar_select %p187, %s186, 63
          %s189 = smul.addr %s188, 8
          %s190 = scalar_lea.vmem %s1, %s189
          %s191 = smul.u32 32, %s20
        $region24: #{tpu_custom_call.1} parent=15 // pred_fallthru
          _
        // Predicated region
        $region25: #{tpu_custom_call.1} parent=15 // pred_check
          %p192 = pneg %p97
        $region26: #{tpu_custom_call.1} parent=15 // pred_check_branch
          %194 = sbr.rel (%p192) target = $region28
        $region27: #{tpu_custom_call.1} parent=15 // pred_region
          %s195 = smul.u32 2, %s20
          %p196 = scmp.lt.s32.totalorder %s195, 3
          %s197 = scalar_select %p196, %s195, 3
          %s198 = scalar_lea.vmem %s2, %s197
          %s199 = smul.u32 2, %s20
        $region28: #{tpu_custom_call.1} parent=15 // pred_fallthru
          _
        // Predicated region
        $region29: #{tpu_custom_call.1} parent=15 // pred_check
          %p200 = pneg %p123
        $region30: #{tpu_custom_call.1} parent=15 // pred_check_branch
          %202 = sbr.rel (%p200) target = $region32
        $region31: #{tpu_custom_call.1} parent=15 // pred_region
          %p203 = scmp.lt.s32.totalorder %s21, 1
          %s204 = scalar_select %p203, %s21, 1
          %s205 = smul.addr %s204, 8
          %s206 = scalar_lea.vmem %s3, %s205
        $region32: #{tpu_custom_call.1} parent=15 // pred_fallthru
          _
      $region16: #{tpu_custom_call.1} parent=5 // pred_fallthru
        _
      %p207 = scmp.le.s32.totalorder 1, %s13
      %p208 = scmp.lt.s32.totalorder %s13, 5
      %p209 = pnand %p207, %p208
      %p210 = pneg %p209
      // Predicated region
      $region33: #{tpu_custom_call.1} parent=5 // pred_check
        _
      $region34: #{tpu_custom_call.1} parent=5 // pred_check_branch
        %212 = sbr.rel (%p209) target = $region36
      $region35: #{tpu_custom_call.1} parent=5 // pred_region
        %s213 = ssub.s32 %s13, 1
        %p214 = scmp.lt.s32.totalorder %s23, 1
        %s215 = scalar_select %p214, %s23, 1
        %s216 = smul.addr %s215, 8
        %s217 = scalar_lea.vmem %s0, %s216
        %p218 = pneg %p51
        %p219 = pneg %p48
        %s220 = smul.u32 32, %s22
        %p221 = scmp.lt.s32.totalorder %s220, 63
        %s222 = scalar_select %p221, %s220, 63
        %s223 = smul.addr %s222, 8
        %s224 = scalar_lea.vmem %s1, %s223
        %p225 = pneg %p77
        %p226 = pneg %p74
        %s227 = smul.u32 2, %s22
        %p228 = scmp.lt.s32.totalorder %s227, 3
        %s229 = scalar_select %p228, %s227, 3
        %s230 = scalar_lea.vmem %s2, %s229
        %p231 = pneg %p103
        %p232 = pneg %p100
        %p233 = scmp.lt.s32.totalorder %s23, 1
        %s234 = scalar_select %p233, %s23, 1
        %s235 = smul.addr %s234, 8
        %s236 = scalar_lea.vmem %s3, %s235
        %p237 = pneg %p129
        %p238 = pneg %p126
        %p239 = pneg %p157
        %p240 = pneg %p154
        %s241 = sand.u32 %s144, 1
        %s242 = scalar_lea.sflag [#allocation3], %s241
        %s243 = sand.u32 %s144, 1
        %s244 = smul.addr %s243, 16
        %s245 = scalar_lea.vmem [#allocation2], %s244
        %p246 = scmp.lt.s32.totalorder %s23, 1
        %s247 = scalar_select %p246, %s23, 1
        %s248 = smul.addr %s247, 8
        %s249 = scalar_lea.vmem %s0, %s248
        %s250 = smul.u32 32, %s22
        %p251 = scmp.lt.s32.totalorder %s250, 63
        %s252 = scalar_select %p251, %s250, 63
        %s253 = smul.addr %s252, 8
        %s254 = scalar_lea.vmem %s1, %s253
        %s255 = smul.u32 32, %s22
        %s256 = smul.u32 2, %s22
        %p257 = scmp.lt.s32.totalorder %s256, 3
        %s258 = scalar_select %p257, %s256, 3
        %s259 = scalar_lea.vmem %s2, %s258
        %s260 = smul.u32 2, %s22
        %p261 = scmp.lt.s32.totalorder %s23, 1
        %s262 = scalar_select %p261, %s23, 1
        %s263 = smul.addr %s262, 8
        %s264 = scalar_lea.vmem %s3, %s263
        %s265 = smul.u32 2, %s22
        %v266 = vld [vmem:[%s249] sm:$0xff]
        %v267 = vld [vmem:[%s254] sm:$0xff]
        %v268 = vld [vmem:[%s254 + $0x8] sm:$0xff]
        %v269 = vld [vmem:[%s254 + $0x10] sm:$0xff]
        %v270 = vld [vmem:[%s254 + $0x18] sm:$0xff]
        %v271 = vld [vmem:[%s254 + $0x20] sm:$0xff]
        %v272 = vld [vmem:[%s254 + $0x28] sm:$0xff]
        %v273 = vld [vmem:[%s254 + $0x30] sm:$0xff]
        %v274 = vld [vmem:[%s254 + $0x38] sm:$0xff]
        %v275 = vld [vmem:[%s254 + $0x40] sm:$0xff]
        %v276 = vld [vmem:[%s254 + $0x48] sm:$0xff]
        %v277 = vld [vmem:[%s254 + $0x50] sm:$0xff]
        %v278 = vld [vmem:[%s254 + $0x58] sm:$0xff]
        %v279 = vld [vmem:[%s254 + $0x60] sm:$0xff]
        %v280 = vld [vmem:[%s254 + $0x68] sm:$0xff]
        %v281 = vld [vmem:[%s254 + $0x70] sm:$0xff]
        %v282 = vld [vmem:[%s254 + $0x78] sm:$0xff]
        %v283 = vld [vmem:[%s254 + $0x80] sm:$0xff]
        %v284 = vld [vmem:[%s254 + $0x88] sm:$0xff]
        %v285 = vld [vmem:[%s254 + $0x90] sm:$0xff]
        %v286 = vld [vmem:[%s254 + $0x98] sm:$0xff]
        %v287 = vld [vmem:[%s254 + $0xa0] sm:$0xff]
        %v288 = vld [vmem:[%s254 + $0xa8] sm:$0xff]
        %v289 = vld [vmem:[%s254 + $0xb0] sm:$0xff]
        %v290 = vld [vmem:[%s254 + $0xb8] sm:$0xff]
        %v291 = vld [vmem:[%s254 + $0xc0] sm:$0xff]
        %v292 = vld [vmem:[%s254 + $0xc8] sm:$0xff]
        %v293 = vld [vmem:[%s254 + $0xd0] sm:$0xff]
        %v294 = vld [vmem:[%s254 + $0xd8] sm:$0xff]
        %v295 = vld [vmem:[%s254 + $0xe0] sm:$0xff]
        %v296 = vld [vmem:[%s254 + $0xe8] sm:$0xff]
        %v297 = vld [vmem:[%s254 + $0xf0] sm:$0xff]
        %v298 = vld [vmem:[%s254 + $0xf8] sm:$0xff]
        %vm299 = vcmask 523264
        %v301 = vsel %vm299, %v266, 0
        %v304 = vsel %vm299, %v267, 0
        %v307 = vsel %vm299, %v268, 0
        %v310 = vsel %vm299, %v269, 0
        %v313 = vsel %vm299, %v270, 0
        %v316 = vsel %vm299, %v271, 0
        %v319 = vsel %vm299, %v272, 0
        %v322 = vsel %vm299, %v273, 0
        %v325 = vsel %vm299, %v274, 0
        %v328 = vsel %vm299, %v275, 0
        %v331 = vsel %vm299, %v276, 0
        %v334 = vsel %vm299, %v277, 0
        %v337 = vsel %vm299, %v278, 0
        %v340 = vsel %vm299, %v279, 0
        %v343 = vsel %vm299, %v280, 0
        %v346 = vsel %vm299, %v281, 0
        %v349 = vsel %vm299, %v282, 0
        %v352 = vsel %vm299, %v283, 0
        %v355 = vsel %vm299, %v284, 0
        %v358 = vsel %vm299, %v285, 0
        %v361 = vsel %vm299, %v286, 0
        %v364 = vsel %vm299, %v287, 0
        %v367 = vsel %vm299, %v288, 0
        %v370 = vsel %vm299, %v289, 0
        %v373 = vsel %vm299, %v290, 0
        %v376 = vsel %vm299, %v291, 0
        %v379 = vsel %vm299, %v292, 0
        %v382 = vsel %vm299, %v293, 0
        %v385 = vsel %vm299, %v294, 0
        %v388 = vsel %vm299, %v295, 0
        %v391 = vsel %vm299, %v296, 0
        %v394 = vsel %vm299, %v297, 0
        %v397 = vsel %vm299, %v298, 0
        %399 = vmatprep.subr.mxu0 0.0
        %400 = vmatpush1.xpose.msra.mxu0 %v349
        %401 = vmatprep.subr.mxu0 0.0
        %402 = vmatpush1.xpose.msra.mxu0 %v346
        %403 = vmatprep.subr.mxu0 0.0
        %404 = vmatpush1.xpose.msra.mxu0 %v343
        %405 = vmatprep.subr.mxu0 0.0
        %406 = vmatpush1.xpose.msra.mxu0 %v340
        %407 = vmatprep.subr.mxu0 0.0
        %408 = vmatpush1.xpose.msra.mxu0 %v337
        %409 = vmatprep.subr.mxu0 0.0
        %410 = vmatpush1.xpose.msra.mxu0 %v334
        %411 = vmatprep.subr.mxu0 0.0
        %412 = vmatpush1.xpose.msra.mxu0 %v331
        %413 = vmatprep.subr.mxu0 0.0
        %414 = vmatpush1.xpose.msra.mxu0 %v328
        %415 = vmatprep.subr.mxu0 0.0
        %416 = vmatpush1.xpose.msra.mxu0 %v325
        %417 = vmatprep.subr.mxu0 0.0
        %418 = vmatpush1.xpose.msra.mxu0 %v322
        %419 = vmatprep.subr.mxu0 0.0
        %420 = vmatpush1.xpose.msra.mxu0 %v319
        %421 = vmatprep.subr.mxu0 0.0
        %422 = vmatpush1.xpose.msra.mxu0 %v316
        %423 = vmatprep.subr.mxu0 0.0
        %424 = vmatpush1.xpose.msra.mxu0 %v313
        %425 = vmatprep.subr.mxu0 0.0
        %426 = vmatpush1.xpose.msra.mxu0 %v310
        %427 = vmatprep.subr.mxu0 0.0
        %428 = vmatpush1.xpose.msra.mxu0 %v307
        %429 = vmatprep.subr.mxu0 0.0
        %430 = vmatpush1.xpose.msra.mxu0 %v304
        %431 = vmatprep.subr.mxu0 0.0
        %432 = vmatpush2.xpose.msra.mxu0 %v397
        %433 = vmatprep.subr.mxu0 0.0
        %434 = vmatpush2.xpose.msra.mxu0 %v394
        %435 = vmatprep.subr.mxu0 0.0
        %436 = vmatpush2.xpose.msra.mxu0 %v391
        %437 = vmatprep.subr.mxu0 0.0
        %438 = vmatpush2.xpose.msra.mxu0 %v388
        %439 = vmatprep.subr.mxu0 0.0
        %440 = vmatpush2.xpose.msra.mxu0 %v385
        %441 = vmatprep.subr.mxu0 0.0
        %442 = vmatpush2.xpose.msra.mxu0 %v382
        %443 = vmatprep.subr.mxu0 0.0
        %444 = vmatpush2.xpose.msra.mxu0 %v379
        %445 = vmatprep.subr.mxu0 0.0
        %446 = vmatpush2.xpose.msra.mxu0 %v376
        %447 = vmatprep.subr.mxu0 0.0
        %448 = vmatpush2.xpose.msra.mxu0 %v373
        %449 = vmatprep.subr.mxu0 0.0
        %450 = vmatpush2.xpose.msra.mxu0 %v370
        %451 = vmatprep.subr.mxu0 0.0
        %452 = vmatpush2.xpose.msra.mxu0 %v367
        %453 = vmatprep.subr.mxu0 0.0
        %454 = vmatpush2.xpose.msra.mxu0 %v364
        %455 = vmatprep.subr.mxu0 0.0
        %456 = vmatpush2.xpose.msra.mxu0 %v361
        %457 = vmatprep.subr.mxu0 0.0
        %458 = vmatpush2.xpose.msra.mxu0 %v358
        %459 = vmatprep.subr.mxu0 0.0
        %460 = vmatpush2.xpose.msra.mxu0 %v355
        %461 = vmatprep.subr.mxu0 0.0
        %462 = vmatpush2.xpose.msra.mxu0 %v352
        %463 = vmatprep.mubr.f32.mxu0 0.0
        %464 = vmatmul.mubr.f32.gmra.mxu0 %v301
        %v465 = vpop.f32.mrf.mxu0
        %v466 = vadd.f32 0.0, %v465
        %v467 = vpop.f32.mrf.mxu0
        %v468 = vadd.f32 0.0, %v467
        %469 = vdwg.mxu0
        %v470 = vld [vmem:[%s259] sm:$0x3]
        %v472 = vlaneseq
        %v473 = vshrl.u32 %v472, 7
        %v474 = vsub.s32 0, %v473
        %v475 = vrot.slane %v470, %v474
        %v476 = vlaneseq
        %v477 = vshrl.u32 %v476, 7
        %v478 = vsub.s32 1, %v477
        %v479 = vrot.slane %v470, %v478
        %v482 = vmul.f32 %v466, %v475
        %v483 = vmul.f32 %v468, %v479
        %v484 = vmul.f32 %v482, 64.0
        %v485 = vmul.f32 %v483, 64.0
        %v486 = vmul.f32 %v482, %v482
        %v487 = vmul.f32 %v483, %v483
        %v488 = vsub.f32 1.0, %v486
        %v489 = vsub.f32 1.0, %v487
        %v490 = vmax.f32 %v488, 1e-09
        %v491 = vmax.f32 %v489, 1e-09
        %v492 = vrsqrt.pop %v490
        %v493 = vmul.f32 %v490, %v492
        %vm494 = vcmp.eq.f32.partialorder %v490, inf
        %v495 = vsel %vm494, %v490, %v493
        %vm496 = vcmp.eq.f32.partialorder %v490, 0.0
        %v497 = vand.u32 %v490, 2147483648
        %v498 = vsel %vm496, %v497, %v495
        %v499 = vrsqrt.pop %v491
        %v500 = vmul.f32 %v491, %v499
        %vm501 = vcmp.eq.f32.partialorder %v491, inf
        %v502 = vsel %vm501, %v491, %v500
        %vm503 = vcmp.eq.f32.partialorder %v491, 0.0
        %v504 = vand.u32 %v491, 2147483648
        %v505 = vsel %vm503, %v504, %v502
        %v506 = vmul.f32 %v484, 0.87758255
        %v507 = vmul.f32 %v485, 0.87758255
        %v508 = vmul.f32 %v498, 30.683235
        %v509 = vmul.f32 %v505, 30.683235
        %v510 = vsub.f32 %v506, %v508
        %v511 = vsub.f32 %v507, %v509
        %vm512 = vcmp.gt.f32.partialorder %v484, -56.165283
        %vm513 = vcmp.gt.f32.partialorder %v485, -56.165283
        %v514 = vsub.f32 %v484, 15.341618
        %v515 = vsub.f32 %v485, 15.341618
        %v516 = vsel %vm512, %v510, %v514
        %v517 = vsel %vm513, %v511, %v515
        %v518 = vlaneseq
        %v519 = vand.u32 %v518, 127
        %v520 = vadd.s32 %v519, 128
        %v521 = vld [vmem:[%s264] sm:$0xff]
        %s522 = smul.u32 %s22, 256
        %v523 = vstv %s522
        %v524 = vsub.s32 %v521, %v523
        %525 = vset.pattern.permute.xlu0 0
        %526 = vperm.xlu0 %525, %v524
        %v527 = vpop.permute.xlu0 %526
        %vm528 = vcmp.eq.s32.totalorder %v519, %v527
        %vm529 = vcmp.eq.s32.totalorder %v520, %v527
        %v530 = vsel %vm528, %v516, %v484
        %v531 = vsel %vm529, %v517, %v485
        %532 = vst [vmem:[%s245] sm:$0xff] %v530
        %533 = vst [vmem:[%s245 + $0x8] sm:$0xff] %v531
        %s534 = sand.u32 %s144, 1
        %s535 = scalar_lea.sflag [#allocation3], %s534
        %s536 = sand.u32 %s144, 1
        %s537 = smul.addr %s536, 16
        %s538 = scalar_lea.vmem [#allocation2], %s537
        // Predicated region
        $region37: #{tpu_custom_call.1} parent=35 // pred_check
          %p539 = pneg %p154
        $region38: #{tpu_custom_call.1} parent=35 // pred_check_branch
          %541 = sbr.rel (%p539) target = $region40
        $region39: #{tpu_custom_call.1} parent=35 // pred_region
          %s542 = smul.u32 2, %s22
          %s544 = ssub.s32 256, 256
          %545 = vsyncadd %s535, %s544
          %s546 = smul.addr %s23, 4
          %s547 = sadd.s32 %s542, %s546
          %s548 = smul.addr %s547, 128
          %s549 = scalar_lea.hbm %s4, %s548
          %s551 = sshll.u32 %s538, 4
          %s552 = int_to_ptr.vmem [resolvable:$true] %s551
          %554 = dma.vmem_to_hbm [thread:$0]  %s552, 256, %s549, %s535
        $region40: #{tpu_custom_call.1} parent=35 // pred_fallthru
          _
      $region36: #{tpu_custom_call.1} parent=5 // pred_fallthru
        _
      %p555 = scmp.le.s32.totalorder 2, %s13
      // Predicated region
      $region41: #{tpu_custom_call.1} parent=5 // pred_check
        %p556 = pneg %p555
      $region42: #{tpu_custom_call.1} parent=5 // pred_check_branch
        %558 = sbr.rel (%p556) target = $region44
      $region43: #{tpu_custom_call.1} parent=5 // pred_region
        %s559 = ssub.s32 %s13, 2
        // Predicated region
        $region45: #{tpu_custom_call.1} parent=43 // pred_check
          %p560 = pneg %p160
        $region46: #{tpu_custom_call.1} parent=43 // pred_check_branch
          %562 = sbr.rel (%p560) target = $region48
        $region47: #{tpu_custom_call.1} parent=43 // pred_region
          %s563 = sand.u32 %s145, 1
          %s564 = scalar_lea.sflag [#allocation3], %s563
          %s565 = sand.u32 %s145, 1
          %s566 = smul.addr %s565, 16
          %s567 = scalar_lea.vmem [#allocation2], %s566
          %568 = dma.done %s564, 256
        $region48: #{tpu_custom_call.1} parent=43 // pred_fallthru
          _
      $region44: #{tpu_custom_call.1} parent=5 // pred_fallthru
        _
    $region6: #{tpu_custom_call.1} parent=1 // loop_footer
      %s17 = sadd.s32 1, %s13
    $region7: #{tpu_custom_call.1} parent=1 // loop_footer_branch
      %12 = sbr.rel target = $region3
    $region8: #{tpu_custom_call.1} parent=1 // loop_exit
      _
    %569 = vsyncpa [#allocation3], 1
    %s570 = scalar_lea.sflag [#allocation3], 1
    %571 = vsyncpa %s570, 1

</llo_original>
